<compile_context>
chip_gen: v7x
topology: tpu7x:2x2x1
jax: 0.10.0
libtpu: 0.0.40
codegen_flags: <defaults>
</compile_context>

<pallas_src>
import jax
import jax.numpy as jnp
from jax.experimental import pallas as pl
from jax.experimental.pallas import tpu as pltpu

_LANES = 512            # lane-dense last dim (multiple of the 128-lane vreg width)
_MAX_BLOCK_ROWS = 1024  # (1024, 512) f32 tile = 2 MiB per buffer


def _poly_kernel(w_ref, x_ref, o_ref):
    # w_ref: SMEM (3,) f32 coefficients; x_ref / o_ref: VMEM (block_rows, 512).
    w0 = w_ref[0]
    w1 = w_ref[1]
    w2 = w_ref[2]
    x = x_ref[...].astype(jnp.float32)
    # Horner form: one fewer VALU multiply per vreg than w0*x*x + w1*x + w2.
    o_ref[...] = ((w0 * x + w1) * x + w2).astype(o_ref.dtype)


def _round_up(x: int, m: int) -> int:
    return ((x + m - 1) // m) * m


def net_forward(xs: jax.Array, W: jax.Array) -> jax.Array:
    """Evaluate W[0]*xs**2 + W[1]*xs + W[2] elementwise with a Pallas TPU kernel.

    xs: any shape, float dtype.  W: (3, 1) coefficients (kept in f32 internally).
    """
    orig_shape = xs.shape
    dtype = xs.dtype

    flat = xs.reshape(-1)                   # zero-copy
    n = flat.shape[0]
    w = W.reshape(3).astype(jnp.float32)    # coefficients stay f32

    if n == 0:
        return xs

    n_main = (n // _LANES) * _LANES         # bulk handled by the Pallas kernel
    tail = n - n_main                       # <512 leftover elements (jnp epilogue)

    pieces = []

    if n_main > 0:
        rows = n_main // _LANES
        x_main = flat if tail == 0 else flat[:n_main]
        x2d = x_main.reshape(rows, _LANES)  # zero-copy view of the bulk

        # Row-block choice: biggest tile that stays well inside every chip's
        # scoped-VMEM default, but at least two blocks for medium inputs so the
        # parallel grid axis shards across both TensorCores on v7x.
        num_blocks = pl.cdiv(rows, _MAX_BLOCK_ROWS)
        if rows >= 16 and num_blocks < 2:
            num_blocks = 2
        block_rows = min(_MAX_BLOCK_ROWS,
                         max(8, _round_up(pl.cdiv(rows, num_blocks), 8)))
        grid = (pl.cdiv(rows, block_rows),)   # ragged final block: no padding

        itemsize = jnp.dtype(dtype).itemsize
        out2d = pl.pallas_call(
            _poly_kernel,
            out_shape=jax.ShapeDtypeStruct((rows, _LANES), dtype),
            grid=grid,
            in_specs=[
                # W: three f32 scalars in SMEM, same block every grid step.
                pl.BlockSpec((3,), lambda i: (0,),
                             memory_space=pltpu.MemorySpace.SMEM),
                # xs: lane-dense row tiles in VMEM.
                pl.BlockSpec((block_rows, _LANES), lambda i: (i, 0)),
            ],
            out_specs=pl.BlockSpec((block_rows, _LANES), lambda i: (i, 0)),
            compiler_params=pltpu.CompilerParams(
                dimension_semantics=("parallel",)),
            cost_estimate=pl.CostEstimate(
                flops=4 * n_main,
                transcendentals=0,
                bytes_accessed=2 * n_main * itemsize),
        )(w, x2d)
        pieces.append(out2d.reshape(-1))

    if tail > 0:
        # <512-element lane tail: negligible work; plain-jnp epilogue keeps the
        # Pallas path pad-free and lane-dense.
        xt = flat[n_main:].astype(jnp.float32)
        pieces.append(((w[0] * xt + w[1]) * xt + w[2]).astype(dtype))

    out = pieces[0] if len(pieces) == 1 else jnp.concatenate(pieces)
    return out.reshape(orig_shape)


if __name__ == "__main__":
    key = jax.random.PRNGKey(0)
    k_w, k_x1, k_x2 = jax.random.split(key, 3)

    # Parameter init mirroring nn.Parameter(torch.rand(3, 1) * 0.001).
    W = jax.random.uniform(k_w, (3, 1), dtype=jnp.float32) * 0.001

    def ref_fn(x):
        return W[0] * x ** 2 + W[1] * x + W[2]

    # Column-vector input (module convention: xs is (N, 1)); n divisible by 512
    # -> pure pad-free Pallas path with multiple row blocks.
    xs_a = jax.random.normal(k_x1, (8192, 1), dtype=jnp.float32)
    out_a = jax.block_until_ready(net_forward(xs_a, W))
    assert out_a.shape == xs_a.shape
    assert jnp.allclose(out_a, ref_fn(xs_a), atol=1e-6, rtol=1e-6)

    # Non-multiple-of-512 size exercising the Pallas bulk + jnp lane-tail path.
    xs_b = jax.random.normal(k_x2, (1000, 1), dtype=jnp.float32)
    out_b = jax.block_until_ready(net_forward(xs_b, W))
    assert out_b.shape == xs_b.shape
    assert jnp.allclose(out_b, ref_fn(xs_b), atol=1e-6, rtol=1e-6)

    print("KERNEL_OK")
</pallas_src>

<mosaic_0001>
module attributes {stable_mosaic.version = 11 : i64} {
  func.func @_poly_kernel(%arg0: i32, %arg1: memref<3xf32, #tpu.memory_space<smem>>, %arg2: memref<8x512xf32, #tpu.memory_space<vmem>>, %arg3: memref<8x512xf32, #tpu.memory_space<vmem>>) attributes {dimension_semantics = [#tpu.dimension_semantics<parallel>], iteration_bounds = array<i64: 2>, scalar_prefetch = 0 : i64, scratch_operands = 0 : i64, tpu.core_type = #tpu.core_type<tc>, window_params = [{transform_indices = @transform_0, window_bounds = array<i64: 3>}, {transform_indices = @transform_1, window_bounds = array<i64: 8, 512>}, {transform_indices = @transform_2, window_bounds = array<i64: 8, 512>}]} {
    %c0 = arith.constant 0 : index
    %0 = memref.load %arg1[%c0] : memref<3xf32, #tpu.memory_space<smem>>
    %c1 = arith.constant 1 : index
    %1 = memref.load %arg1[%c1] : memref<3xf32, #tpu.memory_space<smem>>
    %c2 = arith.constant 2 : index
    %2 = memref.load %arg1[%c2] : memref<3xf32, #tpu.memory_space<smem>>
    %c0_0 = arith.constant 0 : index
    %c0_1 = arith.constant 0 : index
    %3 = vector.load %arg2[%c0_0, %c0_1] : memref<8x512xf32, #tpu.memory_space<vmem>>, vector<8x512xf32>
    %4 = vector.broadcast %0 : f32 to vector<8x512xf32>
    %5 = arith.mulf %4, %3 : vector<8x512xf32>
    %6 = vector.broadcast %1 : f32 to vector<8x512xf32>
    %7 = arith.addf %5, %6 : vector<8x512xf32>
    %8 = arith.mulf %7, %3 : vector<8x512xf32>
    %9 = vector.broadcast %2 : f32 to vector<8x512xf32>
    %10 = arith.addf %8, %9 : vector<8x512xf32>
    %c0_2 = arith.constant 0 : index
    %c0_3 = arith.constant 0 : index
    %11 = vector.load %arg3[%c0_2, %c0_3] : memref<8x512xf32, #tpu.memory_space<vmem>>, vector<8x512xf32>
    tpu.vector_store %arg3[%c0_2, %c0_3], %10 {strides = array<i32>} : memref<8x512xf32, #tpu.memory_space<vmem>>, vector<8x512xf32>,
    return
  }
  func.func @transform_0(%arg0: i32) -> i32 {
    %c0_i32 = arith.constant 0 : i32
    %c0_i32_0 = arith.constant 0 : i32
    return %c0_i32 : i32
  }
  func.func @transform_1(%arg0: i32) -> (i32, i32) {
    %c0_i32 = arith.constant 0 : i32
    %c0_i32_0 = arith.constant 0 : i32
    return %arg0, %c0_i32 : i32, i32
  }
  func.func @transform_2(%arg0: i32) -> (i32, i32) {
    %c0_i32 = arith.constant 0 : i32
    %c0_i32_0 = arith.constant 0 : i32
    return %arg0, %c0_i32 : i32, i32
  }
}

</mosaic_0001>

<llo_original>
// kernel: tpu_custom_call.1
$region0: #{tpu_custom_call.1}
  #allocation0 [shape = 'u32[]', space=smem, size = 0x4, offset = 0x4, fixed_abs, tag = 'smem constant byte address 0x4 - core index']
  #allocation1 [shape = 'u32[144,128]{1,0:T(1,128)}', space=vmem, size = 0x12000, scoped, tag = 'internal scratch']
  %s0 = inlined_call_operand.hbm [shape: f32[3], index: 0, kind: input, shape index: {}]
  %s1 = inlined_call_operand.hbm [shape: f32[16,512], index: 1, kind: input, shape index: {}]
  %s2 = inlined_call_operand.hbm [shape: f32[16,512], index: 2, kind: output, shape index: {}]
  %s3 = sld [smem:[#allocation0]]
  $region49: #{tpu_custom_call.1} parent=0
    _
  %s5 = ssub.s32 1, %s3
  %s6 = scalar_select 0, %s5, %s3
  $region1: #{tpu_custom_call.1} parent=0
    #allocation2 [shape = 'u8[512]{0}', space=smem, size = 0x200, scoped, tag = 'input window, operand 0, single buffered']
    #allocation3 [shape = 's32[2]{0}', space=sflag, size = 0x8, scoped, tag = 'scoped memory for tpu_custom_call.1']
    #allocation4 [shape = 's32[2]{0}', space=sflag, size = 0x8, scoped, tag = 'scoped memory for tpu_custom_call.1']
    #allocation5 [shape = 's32[2]{0}', space=sflag, size = 0x8, scoped, tag = 'scoped memory for tpu_custom_call.1']
    #allocation6 [shape = 'u8[32768]{0}', space=vmem, size = 0x8000, scoped, tag = 'input window, operand 1']
    #allocation7 [shape = 'u8[32768]{0}', space=vmem, size = 0x8000, scoped, tag = 'output window, operand 0']
    %7 = vsyncpa [#allocation5], 0
    %8 = vsyncpa [#allocation3], 0
    %s9 = scalar_lea.sflag [#allocation3], 1
    %10 = vsyncpa %s9, 0
    %11 = vsyncpa [#allocation4], 0
    %s12 = scalar_lea.sflag [#allocation4], 1
    %13 = vsyncpa %s12, 0
    loop: start=0, step=1, limit=4
    $region2: #{tpu_custom_call.1} parent=1 // loop_pre_header
      _
    $region3: #{tpu_custom_call.1} parent=1 // loop_header
      %s15 = sphi 0, %s19
      %p16 = scmp.ge.s32.totalorder %s15, 4
      %s23 = sphi 0, %s23
      %s25 = sphi 0, %s23
      %s26 = sphi 0, %s25
      %s40 = sphi 0, %s26
      %s46 = sphi 0, %s48
      %s49 = sphi 0, %s46
      %s50 = sphi 0, %s49
      %s66 = sphi 0, %s50
      %s72 = sphi 0, %s74
      %s75 = sphi 0, %s72
      %s76 = sphi 0, %s75
      %s92 = sphi 0, %s76
    $region4: #{tpu_custom_call.1} parent=1 // loop_header_branch
      %18 = sbr.rel (%p16) target = $region8
    $region5: #{tpu_custom_call.1} parent=1 // loop_body
      %s20 = ssub.s32 %s15, 1
      %s21 = ssub.s32 %s15, 2
      %s22 = sadd.s32 %s15, 1
      %s24 = sadd.s32 %s23, 1
      %p27 = scmp.eq.s32.totalorder %s15, 1
      %p28 = scmp.ne.s32.totalorder %s23, %s25
      %p29 = scmp.eq.s32.totalorder %s15, 0
      %p30 = por %p28, %p29
      %p31 = scmp.ne.s32.totalorder %s23, %s25
      %p32 = scmp.eq.s32.totalorder %s20, 1
      %p33 = por %p31, %p32
      %p34 = scmp.ne.s32.totalorder %s25, %s26
      %p35 = scmp.eq.s32.totalorder %s20, 0
      %p36 = por %p34, %p35
      %p37 = scmp.ne.s32.totalorder %s25, %s26
      %p38 = scmp.eq.s32.totalorder %s21, 1
      %p39 = por %p37, %p38
      %p41 = scmp.ne.s32.totalorder %s26, %s40
      %p42 = scmp.eq.s32.totalorder %s21, 0
      %p43 = por %p41, %p42
      %s44 = ssub.s32 %s15, %s22
      %p45 = scmp.eq.s32.totalorder %s44, 0
      %s47 = sadd.s32 %s46, 1
      %s48 = scalar_select %p45, %s46, %s47
      %p51 = pneg %p45
      %p52 = scmp.eq.s32.totalorder %s15, 1
      %p53 = por %p51, %p52
      %p54 = scmp.ne.s32.totalorder %s46, %s49
      %p55 = scmp.eq.s32.totalorder %s15, 0
      %p56 = por %p54, %p55
      %p57 = scmp.ne.s32.totalorder %s46, %s49
      %p58 = scmp.eq.s32.totalorder %s20, 1
      %p59 = por %p57, %p58
      %p60 = scmp.ne.s32.totalorder %s49, %s50
      %p61 = scmp.eq.s32.totalorder %s20, 0
      %p62 = por %p60, %p61
      %p63 = scmp.ne.s32.totalorder %s49, %s50
      %p64 = scmp.eq.s32.totalorder %s21, 1
      %p65 = por %p63, %p64
      %p67 = scmp.ne.s32.totalorder %s50, %s66
      %p68 = scmp.eq.s32.totalorder %s21, 0
      %p69 = por %p67, %p68
      %s70 = ssub.s32 %s15, %s22
      %p71 = scmp.eq.s32.totalorder %s70, 0
      %s73 = sadd.s32 %s72, 1
      %s74 = scalar_select %p71, %s72, %s73
      %p77 = pneg %p71
      %p78 = scmp.eq.s32.totalorder %s15, 1
      %p79 = por %p77, %p78
      %p80 = scmp.ne.s32.totalorder %s72, %s75
      %p81 = scmp.eq.s32.totalorder %s15, 0
      %p82 = por %p80, %p81
      %p83 = scmp.ne.s32.totalorder %s72, %s75
      %p84 = scmp.eq.s32.totalorder %s20, 1
      %p85 = por %p83, %p84
      %p86 = scmp.ne.s32.totalorder %s75, %s76
      %p87 = scmp.eq.s32.totalorder %s20, 0
      %p88 = por %p86, %p87
      %p89 = scmp.ne.s32.totalorder %s75, %s76
      %p90 = scmp.eq.s32.totalorder %s21, 1
      %p91 = por %p89, %p90
      %p93 = scmp.ne.s32.totalorder %s76, %s92
      %p94 = scmp.eq.s32.totalorder %s21, 0
      %p95 = por %p93, %p94
      %p96 = scmp.le.s32.totalorder 1, %s15
      %p97 = scmp.lt.s32.totalorder %s15, 3
      %p98 = pnand %p96, %p97
      %p99 = pneg %p98
      // Predicated region
      $region9: #{tpu_custom_call.1} parent=5 // pred_check
        _
      $region10: #{tpu_custom_call.1} parent=5 // pred_check_branch
        %101 = sbr.rel (%p98) target = $region12
      $region11: #{tpu_custom_call.1} parent=5 // pred_region
        %s102 = ssub.s32 %s15, 1
        // Predicated region
        $region13: #{tpu_custom_call.1} parent=11 // pred_check
          %p103 = pneg %p36
        $region14: #{tpu_custom_call.1} parent=11 // pred_check_branch
          %105 = sbr.rel (%p103) target = $region16
        $region15: #{tpu_custom_call.1} parent=11 // pred_region
          %s107 = ssub.s32 16, 16
          %108 = vsyncadd [#allocation5], %s107
          %111 = dma.hbm_to_smem %s0, 16, [#allocation2], [#allocation5]
        $region16: #{tpu_custom_call.1} parent=11 // pred_fallthru
          _
      $region12: #{tpu_custom_call.1} parent=5 // pred_fallthru
        _
      %p112 = scmp.lt.s32.totalorder %s15, 2
      // Predicated region
      $region17: #{tpu_custom_call.1} parent=5 // pred_check
        %p113 = pneg %p112
      $region18: #{tpu_custom_call.1} parent=5 // pred_check_branch
        %115 = sbr.rel (%p113) target = $region20
      $region19: #{tpu_custom_call.1} parent=5 // pred_region
        // Predicated region
        $region21: #{tpu_custom_call.1} parent=19 // pred_check
          %p116 = pneg %p56
        $region22: #{tpu_custom_call.1} parent=19 // pred_check_branch
          %118 = sbr.rel (%p116) target = $region24
        $region23: #{tpu_custom_call.1} parent=19 // pred_region
          %s119 = sand.u32 %s46, 1
          %s120 = scalar_lea.sflag [#allocation3], %s119
          %s121 = sand.u32 %s46, 1
          %s122 = smul.addr %s121, 32
          %s123 = scalar_lea.vmem [#allocation6], %s122
          %s125 = ssub.s32 512, 512
          %126 = vsyncadd %s120, %s125
          %s127 = smul.addr %s15, 4
          %s128 = smul.addr %s127, 128
          %s129 = scalar_lea.hbm %s1, %s128
          %s131 = sshll.u32 %s123, 4
          %s132 = int_to_ptr.vmem [resolvable:$true] %s131
          %134 = dma.hbm_to_vmem [thread:$0]  %s129, 512, %s132, %s120
        $region24: #{tpu_custom_call.1} parent=19 // pred_fallthru
          _
      $region20: #{tpu_custom_call.1} parent=5 // pred_fallthru
        _
      %p135 = scmp.le.s32.totalorder 1, %s15
      %p136 = scmp.lt.s32.totalorder %s15, 3
      %p137 = pnand %p135, %p136
      %p138 = pneg %p137
      // Predicated region
      $region25: #{tpu_custom_call.1} parent=5 // pred_check
        _
      $region26: #{tpu_custom_call.1} parent=5 // pred_check_branch
        %140 = sbr.rel (%p137) target = $region28
      $region27: #{tpu_custom_call.1} parent=5 // pred_region
        %s141 = ssub.s32 %s15, 1
        // Predicated region
        $region29: #{tpu_custom_call.1} parent=27 // pred_check
          %p142 = pneg %p36
        $region30: #{tpu_custom_call.1} parent=27 // pred_check_branch
          %144 = sbr.rel (%p142) target = $region32
        $region31: #{tpu_custom_call.1} parent=27 // pred_region
          %145 = dma.done [#allocation5], 16
        $region32: #{tpu_custom_call.1} parent=27 // pred_fallthru
          _
        %s146 = sand.u32 %s49, 1
        %s147 = scalar_lea.sflag [#allocation3], %s146
        %s148 = sand.u32 %s49, 1
        %s149 = smul.addr %s148, 32
        %s150 = scalar_lea.vmem [#allocation6], %s149
        // Predicated region
        $region33: #{tpu_custom_call.1} parent=27 // pred_check
          %p151 = pneg %p62
        $region34: #{tpu_custom_call.1} parent=27 // pred_check_branch
          %153 = sbr.rel (%p151) target = $region36
        $region35: #{tpu_custom_call.1} parent=27 // pred_region
          %154 = dma.done %s147, 512
        $region36: #{tpu_custom_call.1} parent=27 // pred_fallthru
          _
        %155 = sfence
        %p156 = pneg %p36
        %p157 = pneg %p33
        %s158 = sand.u32 %s49, 1
        %s159 = scalar_lea.sflag [#allocation3], %s158
        %s160 = sand.u32 %s49, 1
        %s161 = smul.addr %s160, 32
        %s162 = scalar_lea.vmem [#allocation6], %s161
        %p163 = pneg %p62
        %p164 = pneg %p59
        %p165 = pneg %p88
        %p166 = pneg %p85
        %s167 = sand.u32 %s75, 1
        %s168 = scalar_lea.sflag [#allocation4], %s167
        %s169 = sand.u32 %s75, 1
        %s170 = smul.addr %s169, 32
        %s171 = scalar_lea.vmem [#allocation7], %s170
        %s172 = sld [smem:[#allocation2]]
        %s173 = sld [smem:[#allocation2 + $0x1]]
        %s174 = sld [smem:[#allocation2 + $0x2]]
        %v175 = vld [vmem:[%s150] sm:$0xff]
        %v176 = vld [vmem:[%s150 + $0x8] sm:$0xff]
        %v177 = vld [vmem:[%s150 + $0x10] sm:$0xff]
        %v178 = vld [vmem:[%s150 + $0x18] sm:$0xff]
        %v179 = vstv %s172
        %v180 = vmul.f32 %v179, %v175
        %v181 = vmul.f32 %v179, %v176
        %v182 = vmul.f32 %v179, %v177
        %v183 = vmul.f32 %v179, %v178
        %v184 = vstv %s173
        %v185 = vadd.f32 %v180, %v184
        %v186 = vadd.f32 %v181, %v184
        %v187 = vadd.f32 %v182, %v184
        %v188 = vadd.f32 %v183, %v184
        %v189 = vmul.f32 %v185, %v175
        %v190 = vmul.f32 %v186, %v176
        %v191 = vmul.f32 %v187, %v177
        %v192 = vmul.f32 %v188, %v178
        %v193 = vstv %s174
        %v194 = vadd.f32 %v189, %v193
        %v195 = vadd.f32 %v190, %v193
        %v196 = vadd.f32 %v191, %v193
        %v197 = vadd.f32 %v192, %v193
        %198 = vst [vmem:[%s171] sm:$0xff] %v194
        %199 = vst [vmem:[%s171 + $0x8] sm:$0xff] %v195
        %200 = vst [vmem:[%s171 + $0x10] sm:$0xff] %v196
        %201 = vst [vmem:[%s171 + $0x18] sm:$0xff] %v197
        %s202 = sand.u32 %s75, 1
        %s203 = scalar_lea.sflag [#allocation4], %s202
        %s204 = sand.u32 %s75, 1
        %s205 = smul.addr %s204, 32
        %s206 = scalar_lea.vmem [#allocation7], %s205
        // Predicated region
        $region37: #{tpu_custom_call.1} parent=27 // pred_check
          %p207 = pneg %p85
        $region38: #{tpu_custom_call.1} parent=27 // pred_check_branch
          %209 = sbr.rel (%p207) target = $region40
        $region39: #{tpu_custom_call.1} parent=27 // pred_region
          %s211 = ssub.s32 512, 512
          %212 = vsyncadd %s203, %s211
          %s213 = smul.addr %s20, 4
          %s214 = smul.addr %s213, 128
          %s215 = scalar_lea.hbm %s2, %s214
          %s217 = sshll.u32 %s206, 4
          %s218 = int_to_ptr.vmem [resolvable:$true] %s217
          %220 = dma.vmem_to_hbm [thread:$0]  %s218, 512, %s215, %s203
        $region40: #{tpu_custom_call.1} parent=27 // pred_fallthru
          _
      $region28: #{tpu_custom_call.1} parent=5 // pred_fallthru
        _
      %p221 = scmp.le.s32.totalorder 2, %s15
      // Predicated region
      $region41: #{tpu_custom_call.1} parent=5 // pred_check
        %p222 = pneg %p221
      $region42: #{tpu_custom_call.1} parent=5 // pred_check_branch
        %224 = sbr.rel (%p222) target = $region44
      $region43: #{tpu_custom_call.1} parent=5 // pred_region
        %s225 = ssub.s32 %s15, 2
        // Predicated region
        $region45: #{tpu_custom_call.1} parent=43 // pred_check
          %p226 = pneg %p91
        $region46: #{tpu_custom_call.1} parent=43 // pred_check_branch
          %228 = sbr.rel (%p226) target = $region48
        $region47: #{tpu_custom_call.1} parent=43 // pred_region
          %s229 = sand.u32 %s76, 1
          %s230 = scalar_lea.sflag [#allocation4], %s229
          %s231 = sand.u32 %s76, 1
          %s232 = smul.addr %s231, 32
          %s233 = scalar_lea.vmem [#allocation7], %s232
          %234 = dma.done %s230, 512
        $region48: #{tpu_custom_call.1} parent=43 // pred_fallthru
          _
      $region44: #{tpu_custom_call.1} parent=5 // pred_fallthru
        _
    $region6: #{tpu_custom_call.1} parent=1 // loop_footer
      %s19 = sadd.s32 1, %s15
    $region7: #{tpu_custom_call.1} parent=1 // loop_footer_branch
      %14 = sbr.rel target = $region3
    $region8: #{tpu_custom_call.1} parent=1 // loop_exit
      _
    %235 = vsyncpa [#allocation3], 1
    %s236 = scalar_lea.sflag [#allocation3], 1
    %237 = vsyncpa %s236, 1
    %238 = vsyncpa [#allocation4], 1
    %s239 = scalar_lea.sflag [#allocation4], 1
    %240 = vsyncpa %s239, 1
    %241 = vsyncpa [#allocation5], 1
    %s242 = scalar_lea.sflag [#allocation5], 1
    %243 = vsyncpa %s242, 1

</llo_original>
